<compile_context>
chip_gen: v5e
topology: v5e:2x2
jax: 0.10.0
libtpu: 0.0.40
codegen_flags: <defaults>
</compile_context>

<pallas_src>
import functools

import jax
import jax.numpy as jnp
from jax import lax
from jax.experimental import pallas as pl
from jax.experimental.pallas import tpu as pltpu

_LANE = 128


def _ce_kernel(logits_ref, target_ref, out_ref, *scratch, num_rows,
               num_classes, single_c_tile, mask_classes, mask_rows):
    # logits_ref: (TN, TC) native dtype   (VMEM tile)
    # target_ref: (TN, 1)  int32          (VMEM tile, resident across C axis)
    # out_ref:    (TN, 1)  float32        (per-row loss)
    # scratch: () in the single-C-tile case, else (m_sc, d_sc, p_sc) f32 (TN,1)
    tn, tc = logits_ref.shape
    lane = lax.broadcasted_iota(jnp.int32, (tn, tc), 1)    # loop-invariant
    x_nat = logits_ref[...]                                # native dtype
    tgt = target_ref[...]                                  # (TN, 1) int32
    neg_inf = jnp.asarray(-jnp.inf, dtype=x_nat.dtype)

    if single_c_tile:
        # -------- specialized path: whole class dim in one tile --------
        if mask_classes:  # never true when tc == c, kept for completeness
            x_nat = jnp.where(lane < num_classes, x_nat, neg_inf)
        m = jnp.max(x_nat, axis=-1, keepdims=True).astype(jnp.float32)
        x_f32 = x_nat.astype(jnp.float32)
        d = jnp.sum(jnp.exp(x_f32 - m), axis=-1, keepdims=True)
        picked = jnp.sum(jnp.where(lane == tgt, x_f32, 0.0),
                         axis=-1, keepdims=True)
        loss = m + jnp.log(d) - picked
        if mask_rows:
            i = pl.program_id(0)
            row = i * tn + lax.broadcasted_iota(jnp.int32, (tn, 1), 0)
            loss = jnp.where(row < num_rows, loss, 0.0)
        out_ref[...] = loss
        return

    # -------- streaming (online logsumexp) path over C tiles --------
    m_sc, d_sc, p_sc = scratch
    i = pl.program_id(0)
    k = pl.program_id(1)
    nk = pl.num_programs(1)

    @pl.when(k == 0)
    def _():
        m_sc[...] = jnp.full_like(m_sc, -jnp.inf)
        d_sc[...] = jnp.zeros_like(d_sc)
        p_sc[...] = jnp.zeros_like(p_sc)

    if mask_classes:
        # Only emitted when C is not a multiple of TC; the compare is against
        # a per-tile scalar so the iota stays loop-invariant.
        rem = num_classes - k * tc
        x_nat = jnp.where(lane < rem, x_nat, neg_inf)

    # Online logsumexp: max in the native dtype (exact), exp/accumulate in f32.
    m_prev = m_sc[...]
    m_tile = jnp.max(x_nat, axis=-1, keepdims=True).astype(jnp.float32)
    m_new = jnp.maximum(m_prev, m_tile)
    x_f32 = x_nat.astype(jnp.float32)
    alpha = jnp.exp(m_prev - m_new)
    d_sc[...] = d_sc[...] * alpha + jnp.sum(jnp.exp(x_f32 - m_new),
                                            axis=-1, keepdims=True)
    m_sc[...] = m_new

    # Gather logits[i, target[i]] for targets falling in this C tile via a
    # one-hot select against the tile-local column index (targets < C, so the
    # masked columns never match).
    tgt_local = tgt - k * tc                                 # (TN, 1) int op
    p_sc[...] = p_sc[...] + jnp.sum(jnp.where(lane == tgt_local, x_f32, 0.0),
                                    axis=-1, keepdims=True)

    @pl.when(k == nk - 1)
    def _():
        loss = m_sc[...] + jnp.log(d_sc[...]) - p_sc[...]
        if mask_rows:
            row = i * tn + lax.broadcasted_iota(jnp.int32, (tn, 1), 0)
            loss = jnp.where(row < num_rows, loss, 0.0)
        out_ref[...] = loss


def _choose_tiles(n, c, itemsize):
    """Pick (TN, TC).

    - sublane multiple is dtype-aware (8 / 16 / 32 for 4- / 2- / 1-byte types)
      so blocks align with the native packed tiling.
    - raw block budget ~4 MiB for f32, ~2 MiB for 16-bit inputs so the f32
      upcast working set (plus double buffering) stays inside v7x's scoped
      VMEM while v5e/v6e keep >= 2-4 MiB DMA blocks.
    - TN comes from the byte budget (no arbitrary row cap), then is capped at
      ~ceil(N/2) so the "parallel" row axis has work for both v7x TensorCores.
    """
    sub = {4: 8, 2: 16, 1: 32}.get(itemsize, 8)
    budget = 4 * 1024 * 1024 if itemsize >= 4 else 2 * 1024 * 1024

    if c * itemsize * sub <= budget:
        tc = c                                   # full class dim in one tile
    else:
        tc = max(_LANE, (budget // (sub * itemsize)) // _LANE * _LANE)

    tn = budget // max(1, tc * itemsize)
    tn = max(sub, (tn // sub) * sub)

    n_pad = ((n + sub - 1) // sub) * sub
    if n_pad > sub:
        half = ((n_pad // 2 + sub - 1) // sub) * sub   # ceil(n/2) -> sublane
        tn = min(tn, half)
    tn = min(tn, n_pad)
    return tn, tc


def cross_entropy_sum(logits, target, *, block_rows=None, block_classes=None):
    """Sum-reduced cross entropy via a gridded Pallas TPU kernel."""
    n, c = logits.shape
    itemsize = jnp.dtype(logits.dtype).itemsize
    tn, tc = _choose_tiles(n, c, itemsize)
    if block_rows is not None:
        tn = block_rows
    if block_classes is not None:
        tc = block_classes

    grid_n = pl.cdiv(n, tn)
    grid_k = pl.cdiv(c, tc)
    n_pad = grid_n * tn
    single = grid_k == 1

    tgt = target.astype(jnp.int32).reshape(n, 1)
    kernel = functools.partial(
        _ce_kernel,
        num_rows=n,
        num_classes=c,
        single_c_tile=single,
        mask_classes=(c % tc != 0),
        mask_rows=(n % tn != 0),
    )

    scratch = [] if single else [pltpu.VMEM((tn, 1), jnp.float32)] * 3

    per_row = pl.pallas_call(
        kernel,
        out_shape=jax.ShapeDtypeStruct((n_pad, 1), jnp.float32),
        grid=(grid_n, grid_k),
        in_specs=[
            pl.BlockSpec((tn, tc), lambda i, k: (i, k)),
            pl.BlockSpec((tn, 1), lambda i, k: (i, 0)),
        ],
        out_specs=pl.BlockSpec((tn, 1), lambda i, k: (i, 0)),
        scratch_shapes=scratch,
        compiler_params=pltpu.CompilerParams(
            dimension_semantics=("parallel", "arbitrary"),
            vmem_limit_bytes=32 * 1024 * 1024,
        ),
        cost_estimate=pl.CostEstimate(
            flops=5 * n * c,
            transcendentals=n * c,
            bytes_accessed=n * c * itemsize + n * 4 + n_pad * 4,
        ),
    )(logits, tgt)

    # Padded / masked rows were written as 0, so a plain sum is exact.
    return jnp.sum(per_row)


class CrossEntropyLoss:
    """Mirror of the PyTorch module's forward: returns (loss, metrics)."""

    def __init__(self):
        self.metrics = ['total_loss']

    def forward(self, input, target, *args):
        loss = cross_entropy_sum(input, target)
        # Keep the metric as a device scalar; a per-step host sync
        # (float(jax.device_get(loss))) would serialize the training pipeline.
        metrics = {'total_loss': loss}
        return (loss, metrics)

    __call__ = forward


def _reference(logits, target):
    log_probs = jax.nn.log_softmax(logits.astype(jnp.float32), axis=-1)
    return -jnp.sum(log_probs[jnp.arange(logits.shape[0]), target])


if __name__ == "__main__":
    key = jax.random.PRNGKey(0)
    k1, k2, k3, k4 = jax.random.split(key, 4)

    # --- test 1: small shapes, single-C-tile specialized path ---
    N, C = 8, 32
    logits = jax.random.normal(k1, (N, C), dtype=jnp.float32)
    target = jax.random.randint(k2, (N,), 0, C, dtype=jnp.int32)

    module = CrossEntropyLoss()
    loss, metrics = module(logits, target)
    loss = jax.block_until_ready(loss)
    ref = _reference(logits, target)
    assert jnp.allclose(loss, ref, rtol=1e-5, atol=1e-4), (loss, ref)

    # --- test 2: forced small tiles to exercise the streaming online-logsumexp
    # path (multi C tile, padded last C tile, padded last row tile) ---
    N2, C2 = 12, 300
    logits2 = jax.random.normal(k3, (N2, C2), dtype=jnp.float32)
    target2 = jax.random.randint(k4, (N2,), 0, C2, dtype=jnp.int32)
    loss2 = cross_entropy_sum(logits2, target2, block_rows=8, block_classes=128)
    loss2 = jax.block_until_ready(loss2)
    ref2 = _reference(logits2, target2)
    assert jnp.allclose(loss2, ref2, rtol=2e-5, atol=1e-4), (loss2, ref2)

    print("KERNEL_OK")
</pallas_src>

<mosaic_0001>
module attributes {stable_mosaic.version = 11 : i64} {
  func.func @_ce_kernel(%arg0: i32, %arg1: i32, %arg2: memref<8x32xf32, #tpu.memory_space<vmem>>, %arg3: memref<8x1xi32, #tpu.memory_space<vmem>>, %arg4: memref<8x1xf32, #tpu.memory_space<vmem>>) attributes {dimension_semantics = [#tpu.dimension_semantics<parallel>, #tpu.dimension_semantics<arbitrary>], iteration_bounds = array<i64: 1, 1>, scalar_prefetch = 0 : i64, scratch_operands = 0 : i64, tpu.core_type = #tpu.core_type<tc>, window_params = [{transform_indices = @transform_0, window_bounds = array<i64: 8, 32>}, {transform_indices = @transform_1, window_bounds = array<i64: 8, 1>}, {transform_indices = @transform_2, window_bounds = array<i64: 8, 1>}]} {
    %0 = tpu.iota {dimensions = array<i32: 1>} : vector<8x32xi32>
    %c0 = arith.constant 0 : index
    %c0_0 = arith.constant 0 : index
    %1 = vector.load %arg2[%c0, %c0_0] : memref<8x32xf32, #tpu.memory_space<vmem>>, vector<8x32xf32>
    %c0_1 = arith.constant 0 : index
    %c0_2 = arith.constant 0 : index
    %2 = vector.load %arg3[%c0_1, %c0_2] : memref<8x1xi32, #tpu.memory_space<vmem>>, vector<8x1xi32>
    %cst = arith.constant dense<0xFF800000> : vector<8xf32>
    %3 = vector.multi_reduction <maximumf>, %1, %cst [1] : vector<8x32xf32> to vector<8xf32>
    %4 = vector.shape_cast %3 : vector<8xf32> to vector<8x1xf32>
    %5 = vector.broadcast %4 : vector<8x1xf32> to vector<8x32xf32>
    %6 = arith.subf %1, %5 : vector<8x32xf32>
    %7 = math.exp %6 : vector<8x32xf32>
    %cst_3 = arith.constant dense<0.000000e+00> : vector<8xf32>
    %8 = vector.multi_reduction <add>, %7, %cst_3 [1] : vector<8x32xf32> to vector<8xf32>
    %9 = vector.shape_cast %8 : vector<8xf32> to vector<8x1xf32>
    %10 = vector.broadcast %2 : vector<8x1xi32> to vector<8x32xi32>
    %11 = arith.cmpi eq, %0, %10 : vector<8x32xi32>
    %cst_4 = arith.constant 0.000000e+00 : f32
    %12 = vector.broadcast %cst_4 : f32 to vector<8x32xf32>
    %13 = arith.select %11, %1, %12 : vector<8x32xi1>, vector<8x32xf32>
    %cst_5 = arith.constant dense<0.000000e+00> : vector<8xf32>
    %14 = vector.multi_reduction <add>, %13, %cst_5 [1] : vector<8x32xf32> to vector<8xf32>
    %15 = vector.shape_cast %14 : vector<8xf32> to vector<8x1xf32>
    %16 = math.log %9 : vector<8x1xf32>
    %17 = arith.addf %4, %16 : vector<8x1xf32>
    %18 = arith.subf %17, %15 : vector<8x1xf32>
    %c0_6 = arith.constant 0 : index
    %c0_7 = arith.constant 0 : index
    %19 = vector.load %arg4[%c0_6, %c0_7] : memref<8x1xf32, #tpu.memory_space<vmem>>, vector<8x1xf32>
    tpu.vector_store %arg4[%c0_6, %c0_7], %18 {strides = array<i32>} : memref<8x1xf32, #tpu.memory_space<vmem>>, vector<8x1xf32>,
    return
  }
  func.func @transform_0(%arg0: i32, %arg1: i32) -> (i32, i32) {
    %c0_i32 = arith.constant 0 : i32
    return %arg0, %arg1 : i32, i32
  }
  func.func @transform_1(%arg0: i32, %arg1: i32) -> (i32, i32) {
    %c0_i32 = arith.constant 0 : i32
    %c0_i32_0 = arith.constant 0 : i32
    return %arg0, %c0_i32 : i32, i32
  }
  func.func @transform_2(%arg0: i32, %arg1: i32) -> (i32, i32) {
    %c0_i32 = arith.constant 0 : i32
    %c0_i32_0 = arith.constant 0 : i32
    return %arg0, %c0_i32 : i32, i32
  }
}

</mosaic_0001>

<llo_original>
// kernel: tpu_custom_call.1
$region0: #{tpu_custom_call.1}
  #allocation0 [shape = 'u32[]', space=smem, size = 0x4, offset = 0x4, fixed_abs, tag = 'smem constant byte address 0x4 - core index']
  #allocation1 [shape = 'u32[72,128]{1,0:T(1,128)}', space=vmem, size = 0x9000, scoped, tag = 'internal scratch']
  %s0 = inlined_call_operand.vmem [shape: f32[8,32], index: 0, kind: input, shape index: {}]
  %s1 = inlined_call_operand.vmem [shape: s32[8,1], index: 1, kind: input, shape index: {}]
  %s2 = inlined_call_operand.vmem [shape: f32[8,1], index: 2, kind: output, shape index: {}]
  %s3 = sld [smem:[#allocation0]]
  $region18: #{tpu_custom_call.1} parent=0
    _
  %s5 = ssub.s32 1, %s3
  %s6 = scalar_select 0, %s5, %s3
  // Predicated region
  $region2: #{tpu_custom_call.1} parent=0 // pred_check
    _
  $region3: #{tpu_custom_call.1} parent=0 // pred_check_branch
    %8 = sbr.rel (0) target = $region5
  $region4: #{tpu_custom_call.1} parent=0 // pred_region
    _
  $region5: #{tpu_custom_call.1} parent=0 // pred_fallthru
    _
  // Predicated region
  $region6: #{tpu_custom_call.1} parent=0 // pred_check
    _
  $region7: #{tpu_custom_call.1} parent=0 // pred_check_branch
    %10 = sbr.rel (0) target = $region9
  $region8: #{tpu_custom_call.1} parent=0 // pred_region
    _
  $region9: #{tpu_custom_call.1} parent=0 // pred_fallthru
    _
  %v11 = vlaneseq
  %v12 = vand.u32 %v11, 127
  %v13 = vld [vmem:[%s0] sm:$0xff]
  %v14 = vld [vmem:[%s1] sm:$0xff]
  %vm15 = vcmask 261120
  %v16 = vsel %vm15, %v13, -inf
  %17 = vmax.xlane.f32.xlu0 %v16
  %v18 = vpop.xlane.xlu0 %17
  %v19 = vsub.f32 %v13, %v18
  %v20 = vmul.f32 %v19, 1.442695
  %v21 = vpow.pop %v20
  %v22 = vsel %vm15, %v21, 0.0
  %23 = vadd.xlane.f32.xlu0 %v22
  %v24 = vpop.xlane.xlu0 %23
  %25 = vset.pattern.permute.xlu0 0
  %26 = vperm.xlu0 %25, %v14
  %v27 = vpop.permute.xlu0 %26
  %vm28 = vcmp.eq.s32.totalorder %v12, %v27
  %v29 = vsel %vm28, %v13, 0.0
  %v30 = vsel %vm15, %v29, 0.0
  %31 = vadd.xlane.f32.xlu0 %v30
  %v32 = vpop.xlane.xlu0 %31
  %v33 = vlog2.pop %v24
  %v34 = vmul.f32 %v33, 0.6931472
  %v35 = vadd.f32 %v18, %v34
  %v36 = vsub.f32 %v35, %v32
  %vm37 = vcmask 7168
  %38 = vst.msk [vmem:[%s2] sm:$0xff] %vm37, %v36
  // Predicated region
  $region10: #{tpu_custom_call.1} parent=0 // pred_check
    _
  $region11: #{tpu_custom_call.1} parent=0 // pred_check_branch
    %40 = sbr.rel (0) target = $region13
  $region12: #{tpu_custom_call.1} parent=0 // pred_region
    _
  $region13: #{tpu_custom_call.1} parent=0 // pred_fallthru
    _
  // Predicated region
  $region14: #{tpu_custom_call.1} parent=0 // pred_check
    _
  $region15: #{tpu_custom_call.1} parent=0 // pred_check_branch
    %42 = sbr.rel (0) target = $region17
  $region16: #{tpu_custom_call.1} parent=0 // pred_region
    _
  $region17: #{tpu_custom_call.1} parent=0 // pred_fallthru
    _

</llo_original>
